<compile_context>
chip_gen: v5e
topology: v5e:2x2
jax: 0.10.0
libtpu: 0.0.40
codegen_flags: <defaults>
</compile_context>

<pallas_src>
import math
import jax
import jax.numpy as jnp
from jax.experimental import pallas as pl
from jax.experimental.pallas import tpu as pltpu


def _decoder_kernel(cat_ref, wcT_ref, wdT_ref, x_ref):
    # linear_c on the (pre-concatenated, bias-augmented) input: one MXU pass.
    pre = jnp.dot(cat_ref[...], wcT_ref[...], preferred_element_type=jnp.float32)
    # relu on the VPU. The bias-carrier column of `pre` is exactly 1.0 and
    # stays 1.0 through relu, so the second dot's last weight row adds bd.
    h_tilde = jnp.maximum(pre, 0.0)
    # decoder (sparse-masked weights baked into wdT_aug) + bias, full-block store.
    x_ref[...] = jnp.dot(
        h_tilde, wdT_ref[...], preferred_element_type=jnp.float32
    ).astype(x_ref.dtype)


def decoder_forward(c_t, h_t, params):
    B = c_t.shape[0]
    out_dim = params["WdT_aug"].shape[1]
    # Host-side concat + ones column (folds linear_c bias into WcT_aug).
    ones = jnp.ones((B, 1), c_t.dtype)
    cat_aug = jnp.concatenate([c_t, h_t, ones], axis=-1)        # (B, 2H+1)

    vmem = pl.BlockSpec(memory_space=pltpu.MemorySpace.VMEM)
    return pl.pallas_call(
        _decoder_kernel,
        out_shape=jax.ShapeDtypeStruct((B, out_dim), jnp.float32),
        in_specs=[vmem, vmem, vmem],
        out_specs=vmem,
    )(cat_aug, params["WcT_aug"], params["WdT_aug"])


def init_params(key, tx, hidden_size, weight_sparsity):
    """Deterministic JAX mirror of normalizeSparseWeights + SparseWeights init,
    with the biases folded into augmented, pre-transposed weight matrices."""
    H = hidden_size
    out_dim = 2 * tx
    k_cw, k_cb, k_dw, k_db, k_mask = jax.random.split(key, 5)

    # linear_c: default nn.Linear init -> U(-1/sqrt(fan_in), 1/sqrt(fan_in))
    fan_c = 2 * H
    bound_c = 1.0 / math.sqrt(fan_c)
    Wc = jax.random.uniform(k_cw, (H, 2 * H), jnp.float32, -bound_c, bound_c)
    bc = jax.random.uniform(k_cb, (H,), jnp.float32, -bound_c, bound_c)

    # decoder: normalizeSparseWeights -> fan = int(H * ws), gain('leaky_relu', sqrt(5))
    fan_d = int(H * weight_sparsity)
    gain = math.sqrt(2.0 / (1.0 + 5.0))
    std = gain / math.sqrt(fan_d)
    bound_w = math.sqrt(3.0) * std
    Wd = jax.random.uniform(k_dw, (out_dim, H), jnp.float32, -bound_w, bound_w)
    bound_b = 1.0 / math.sqrt(fan_d)
    bd = jax.random.uniform(k_db, (out_dim,), jnp.float32, -bound_b, bound_b)

    # SparseWeights.rezeroWeights: per output row zero round((1-ws)*H) random inputs.
    # TODO(synk): training-mode re-masking of SparseWeights on every forward is not
    # modeled; the sparsity mask is baked into WdT once at init (inference forward).
    num_zeros = int(round((1.0 - weight_sparsity) * H))
    scores = jax.random.uniform(k_mask, (out_dim, H))
    ranks = jnp.argsort(jnp.argsort(scores, axis=-1), axis=-1)
    mask = (ranks >= num_zeros).astype(jnp.float32)
    Wd = Wd * mask

    # Augmented / pre-transposed packing (biases folded into the weights).
    #   WcT_aug: (2H+1, H+1) = [[Wc^T, 0], [bc, 1]]
    WcT_aug = jnp.zeros((2 * H + 1, H + 1), jnp.float32)
    WcT_aug = WcT_aug.at[: 2 * H, :H].set(Wc.T)
    WcT_aug = WcT_aug.at[2 * H, :H].set(bc)
    WcT_aug = WcT_aug.at[2 * H, H].set(1.0)
    #   WdT_aug: (H+1, 2*tx) = [[Wd^T], [bd]]
    WdT_aug = jnp.zeros((H + 1, out_dim), jnp.float32)
    WdT_aug = WdT_aug.at[:H, :].set(Wd.T)
    WdT_aug = WdT_aug.at[H, :].set(bd)

    return {
        "WcT_aug": WcT_aug,      # (2H+1, H+1)
        "WdT_aug": WdT_aug,      # (H+1, 2*tx)
        # Plain tensors kept for the pure-JAX reference check.
        "Wc": Wc, "bc": bc, "Wd": Wd, "bd": bd,
    }


def reference_forward(c_t, h_t, params):
    """Pure-JAX mirror of the PyTorch Decoder.forward for validation."""
    cat = jnp.concatenate([c_t, h_t], axis=-1)
    h_tilde = jax.nn.relu(cat @ params["Wc"].T + params["bc"])
    return h_tilde @ params["Wd"].T + params["bd"]


if __name__ == "__main__":
    tx, hidden_size, B = 8, 32, 2
    weight_sparsity = 0.4

    key = jax.random.PRNGKey(0)
    kc, kh, kp = jax.random.split(key, 3)
    c_t = jax.random.normal(kc, (B, hidden_size), jnp.float32)
    h_t = jax.random.normal(kh, (B, hidden_size), jnp.float32)
    params = init_params(kp, tx, hidden_size, weight_sparsity)

    x = decoder_forward(c_t, h_t, params)
    jax.block_until_ready(x)

    x_ref = reference_forward(c_t, h_t, params)
    assert x.shape == (B, 2 * tx), "unexpected output shape"
    assert jnp.allclose(x, x_ref, rtol=1e-4, atol=1e-4), "decoder output mismatch"

    print("KERNEL_OK")
</pallas_src>

<mosaic_0001>
module attributes {stable_mosaic.version = 11 : i64} {
  func.func @_decoder_kernel(%arg0: memref<2x65xf32, #tpu.memory_space<vmem>>, %arg1: memref<65x33xf32, #tpu.memory_space<vmem>>, %arg2: memref<33x16xf32, #tpu.memory_space<vmem>>, %arg3: memref<2x16xf32, #tpu.memory_space<vmem>>) attributes {dimension_semantics = [], scalar_prefetch = 0 : i64, scratch_operands = 0 : i64, tpu.core_type = #tpu.core_type<tc>} {
    %c0 = arith.constant 0 : index
    %c0_0 = arith.constant 0 : index
    %0 = vector.load %arg0[%c0, %c0_0] : memref<2x65xf32, #tpu.memory_space<vmem>>, vector<2x65xf32>
    %c0_1 = arith.constant 0 : index
    %c0_2 = arith.constant 0 : index
    %1 = vector.load %arg1[%c0_1, %c0_2] : memref<65x33xf32, #tpu.memory_space<vmem>>, vector<65x33xf32>
    %cst = arith.constant dense<0.000000e+00> : vector<2x33xf32>
    %2 = tpu.matmul %0, %1, %cst {dimension_numbers = #tpu.dot_dimension_numbers<[1], [0], [0], [1], [0, 0, 1, 1], [], []>} : vector<2x65xf32>, vector<65x33xf32>, vector<2x33xf32> -> vector<2x33xf32>
    %cst_3 = arith.constant 0.000000e+00 : f32
    %3 = vector.broadcast %cst_3 : f32 to vector<2x33xf32>
    %4 = arith.maximumf %2, %3 : vector<2x33xf32>
    %c0_4 = arith.constant 0 : index
    %c0_5 = arith.constant 0 : index
    %5 = vector.load %arg2[%c0_4, %c0_5] : memref<33x16xf32, #tpu.memory_space<vmem>>, vector<33x16xf32>
    %cst_6 = arith.constant dense<0.000000e+00> : vector<2x16xf32>
    %6 = tpu.matmul %4, %5, %cst_6 {dimension_numbers = #tpu.dot_dimension_numbers<[1], [0], [0], [1], [0, 0, 1, 1], [], []>} : vector<2x33xf32>, vector<33x16xf32>, vector<2x16xf32> -> vector<2x16xf32>
    %c0_7 = arith.constant 0 : index
    %c0_8 = arith.constant 0 : index
    %7 = vector.load %arg3[%c0_7, %c0_8] : memref<2x16xf32, #tpu.memory_space<vmem>>, vector<2x16xf32>
    tpu.vector_store %arg3[%c0_7, %c0_8], %6 {strides = array<i32>} : memref<2x16xf32, #tpu.memory_space<vmem>>, vector<2x16xf32>,
    return
  }
}

</mosaic_0001>

<llo_original>
// kernel: tpu_custom_call.1
$region0: #{tpu_custom_call.1}
  #allocation0 [shape = 'u32[]', space=smem, size = 0x4, offset = 0x4, fixed_abs, tag = 'smem constant byte address 0x4 - core index']
  #allocation1 [shape = 'u32[72,128]{1,0:T(1,128)}', space=vmem, size = 0x9000, scoped, tag = 'internal scratch']
  %s0 = inlined_call_operand.vmem [shape: f32[2,65], index: 0, kind: input, shape index: {}]
  %s1 = inlined_call_operand.vmem [shape: f32[65,33], index: 1, kind: input, shape index: {}]
  %s2 = inlined_call_operand.vmem [shape: f32[33,16], index: 2, kind: input, shape index: {}]
  %s3 = inlined_call_operand.hbm [shape: f32[2,16], index: 3, kind: output, shape index: {}]
  %s4 = sld [smem:[#allocation0]]
  $region22: #{tpu_custom_call.1} parent=0
    _
  %s6 = ssub.s32 1, %s4
  %s7 = scalar_select 0, %s6, %s4
  $region1: #{tpu_custom_call.1} parent=0
    #allocation2 [shape = 'u8[1024]{0}', space=vmem, size = 0x400, scoped, tag = 'output window, operand 0, single buffered']
    #allocation3 [shape = 's32[1]{0}', space=sflag, size = 0x4, scoped, tag = 'scoped memory for tpu_custom_call.1']
    %8 = vsyncpa [#allocation3], 0
    // Predicated region
    $region2: #{tpu_custom_call.1} parent=1 // pred_check
      _
    $region3: #{tpu_custom_call.1} parent=1 // pred_check_branch
      %10 = sbr.rel (0) target = $region5
    $region4: #{tpu_custom_call.1} parent=1 // pred_region
      _
    $region5: #{tpu_custom_call.1} parent=1 // pred_fallthru
      _
    // Predicated region
    $region6: #{tpu_custom_call.1} parent=1 // pred_check
      _
    $region7: #{tpu_custom_call.1} parent=1 // pred_check_branch
      %12 = sbr.rel (0) target = $region9
    $region8: #{tpu_custom_call.1} parent=1 // pred_region
      _
    $region9: #{tpu_custom_call.1} parent=1 // pred_fallthru
      _
    // Predicated region
    $region10: #{tpu_custom_call.1} parent=1 // pred_check
      _
    $region11: #{tpu_custom_call.1} parent=1 // pred_check_branch
      %14 = sbr.rel (0) target = $region13
    $region12: #{tpu_custom_call.1} parent=1 // pred_region
      _
    $region13: #{tpu_custom_call.1} parent=1 // pred_fallthru
      _
    %v15 = vld [vmem:[%s0] sm:$0x3]
    %v16 = vld [vmem:[%s1] sm:$0xff]
    %v17 = vld [vmem:[%s1 + $0x8] sm:$0xff]
    %v18 = vld [vmem:[%s1 + $0x10] sm:$0xff]
    %v19 = vld [vmem:[%s1 + $0x18] sm:$0xff]
    %v20 = vld [vmem:[%s1 + $0x20] sm:$0xff]
    %v21 = vld [vmem:[%s1 + $0x28] sm:$0xff]
    %v22 = vld [vmem:[%s1 + $0x30] sm:$0xff]
    %v23 = vld [vmem:[%s1 + $0x38] sm:$0xff]
    %v24 = vld [vmem:[%s1 + $0x40] sm:$0x1]
    %vm25 = vcmask 531456
    %v27 = vsel %vm25, %v15, 0
    %vm29 = vcmask 1040384
    %v31 = vsel %vm29, %v24, 0
    %33 = vmatpush.msra.mxu0 0.0
    %34 = vmatpush.msra.mxu0 0.0
    %35 = vmatpush.msra.mxu0 0.0
    %36 = vmatpush.msra.mxu0 0.0
    %37 = vmatpush.msra.mxu0 0.0
    %38 = vmatpush.msra.mxu0 0.0
    %39 = vmatpush.msra.mxu0 0.0
    %40 = vmatpush.msra.mxu0 %v31
    %41 = vmatpush.msra.mxu0 %v23
    %42 = vmatpush.msra.mxu0 %v22
    %43 = vmatpush.msra.mxu0 %v21
    %44 = vmatpush.msra.mxu0 %v20
    %45 = vmatpush.msra.mxu0 %v19
    %46 = vmatpush.msra.mxu0 %v18
    %47 = vmatpush.msra.mxu0 %v17
    %48 = vmatpush.msra.mxu0 %v16
    %49 = vmatmul.f32.gmra.mxu0 %v27
    %v50 = vpop.f32.mrf.mxu0
    %v51 = vadd.f32 0.0, %v50
    %52 = vdwg.mxu0
    %v53 = vmax.f32 %v51, 0.0
    %v54 = vld [vmem:[%s2] sm:$0xff]
    %v55 = vld [vmem:[%s2 + $0x8] sm:$0xff]
    %v56 = vld [vmem:[%s2 + $0x10] sm:$0xff]
    %v57 = vld [vmem:[%s2 + $0x18] sm:$0xff]
    %v58 = vld [vmem:[%s2 + $0x20] sm:$0x1]
    %vm59 = vcmask 269312
    %v61 = vsel %vm59, %v53, 0
    %v64 = vsel %vm29, %v58, 0
    %66 = vmatpush.msra.mxu0 0.0
    %67 = vmatpush.msra.mxu0 0.0
    %68 = vmatpush.msra.mxu0 0.0
    %69 = vmatpush.msra.mxu0 0.0
    %70 = vmatpush.msra.mxu0 0.0
    %71 = vmatpush.msra.mxu0 0.0
    %72 = vmatpush.msra.mxu0 0.0
    %73 = vmatpush.msra.mxu0 0.0
    %74 = vmatpush.msra.mxu0 0.0
    %75 = vmatpush.msra.mxu0 0.0
    %76 = vmatpush.msra.mxu0 0.0
    %77 = vmatpush.msra.mxu0 %v64
    %78 = vmatpush.msra.mxu0 %v57
    %79 = vmatpush.msra.mxu0 %v56
    %80 = vmatpush.msra.mxu0 %v55
    %81 = vmatpush.msra.mxu0 %v54
    %82 = vmatmul.f32.gmra.mxu0 %v61
    %v83 = vpop.f32.mrf.mxu0
    %v84 = vadd.f32 0.0, %v83
    %85 = vdwg.mxu0
    %vm86 = vcmask 123904
    %87 = vst.msk [vmem:[#allocation2] sm:$0x3] %vm86, %v84
    // Predicated region
    $region14: #{tpu_custom_call.1} parent=1 // pred_check
      _
    $region15: #{tpu_custom_call.1} parent=1 // pred_check_branch
      %89 = sbr.rel (0) target = $region17
    $region16: #{tpu_custom_call.1} parent=1 // pred_region
      %91 = vsyncadd [#allocation3], 0
      %s93 = sshll.u32 [#allocation2], 4
      %s94 = int_to_ptr.vmem [resolvable:$true] %s93
      %s95 = sshll.u32 %s3, 4
      %s96 = int_to_ptr.hbm [resolvable:$true] %s95
      %98 = dma.vmem_to_hbm [thread:$0]  %s94, 32, %s96, [#allocation3]
    $region17: #{tpu_custom_call.1} parent=1 // pred_fallthru
      _
    // Predicated region
    $region18: #{tpu_custom_call.1} parent=1 // pred_check
      _
    $region19: #{tpu_custom_call.1} parent=1 // pred_check_branch
      %100 = sbr.rel (0) target = $region21
    $region20: #{tpu_custom_call.1} parent=1 // pred_region
      %102 = dma.done [#allocation3], 32
    $region21: #{tpu_custom_call.1} parent=1 // pred_fallthru
      _
    %103 = vsyncpa [#allocation3], 1

</llo_original>
